<compile_context>
chip_gen: v7x
topology: tpu7x:2x2x1
jax: 0.10.0
libtpu: 0.0.40
codegen_flags: <defaults>
</compile_context>

<pallas_src>
import functools
from typing import NamedTuple, Optional

import jax
import jax.numpy as jnp
from jax.experimental import pallas as pl
from jax.experimental.pallas import tpu as pltpu


# ----------------------------- small helpers --------------------------------

def _cdiv(a: int, b: int) -> int:
    return -(-a // b)


def _round_up(x: int, m: int) -> int:
    return ((x + m - 1) // m) * m


def _balanced_tile(dim: int, target: int, unit: int = 128) -> int:
    """Tile ~<= target (multiple of `unit`) that minimizes padding of `dim`."""
    target = max(unit, (target // unit) * unit)
    if dim <= target:
        return _round_up(dim, unit)
    steps = _cdiv(dim, target)
    return _round_up(_cdiv(dim, steps), unit)


@functools.lru_cache(maxsize=1)
def _chip_info():
    """(vmem_limit_bytes, num_tensorcores, device_kind). Conservative fallbacks."""
    kind = ""
    try:
        kind = jax.devices()[0].device_kind.lower()
    except Exception:  # pragma: no cover - defensive
        pass
    phys_vmem = None
    try:
        info = pltpu.get_tpu_info()
        for attr in ("vmem_capacity_bytes", "vmem_bytes"):
            v = getattr(info, attr, None)
            if v:
                phys_vmem = int(v)
                break
    except Exception:  # pragma: no cover - defensive
        phys_vmem = None
    if phys_vmem is None:
        phys_vmem = 64 * 1024 * 1024  # v7x-sized: safe everywhere
    vmem_limit = int(phys_vmem * 0.7)
    vmem_limit = max(32 * 1024 * 1024, min(vmem_limit, 100 * 1024 * 1024))
    num_tc = 2 if ("v7" in kind or "tpu7" in kind) else 1
    return vmem_limit, num_tc, kind


# ------------------------------- tile plan -----------------------------------

class Plan(NamedTuple):
    small_m: bool
    tm: int
    tn: int
    tk: int
    m_pad: int
    k_pad: int
    n_pad: int
    vmem_limit: int


@functools.lru_cache(maxsize=256)
def _make_plan(M: int, K: int, N: int, itemsize: int, force_general: bool = False,
               tm: Optional[int] = None, tn: Optional[int] = None,
               tk: Optional[int] = None) -> Plan:
    vmem_limit, num_tc, kind = _chip_info()

    m_pad = _round_up(max(M, 1), 16)     # bf16 sublane-packing minimum
    k_pad = _round_up(max(K, 1), 128)
    n_pad = _round_up(max(N, 1), 128)

    # ------------------------- small-M (decode) path -------------------------
    small_m = (not force_general and tm is None and tk is None
               and m_pad <= 256
               and m_pad * k_pad * itemsize <= 4 * 1024 * 1024)
    tn_byte_cap = 0
    if small_m:
        # Byte-bound the full-K weight block: 2 (double buffer) * K_pad*tn*itemsize
        # plus resident x (double-buffered) + misc must fit the VMEM budget.
        x_bytes = 2 * m_pad * k_pad * itemsize
        misc = 2 * 1024 * 1024
        w_budget = int(0.9 * (vmem_limit - x_bytes - misc))
        tn_byte_cap = ((w_budget // 2) // max(k_pad * itemsize, 1)) // 128 * 128
        if tn_byte_cap < 128:
            small_m = False   # K too large -> use general (K-accumulating) path

    if small_m:
        if tn is None:
            tn_ = min(1024, tn_byte_cap)
            # Keep enough N grid steps so the weight stream stays double-buffered
            # (>= 4 steps on 2-TC chips so both cores pipeline, >= 2 on 1-TC chips).
            min_steps = 4 if num_tc >= 2 else 2
            steps_cap = (n_pad // min_steps) // 128 * 128
            if steps_cap >= 128:
                tn_ = min(tn_, steps_cap)
            tn_ = max(tn_, 128)
            tn_ = _balanced_tile(n_pad, tn_)   # minimize pad waste on awkward N
        else:
            tn_ = tn
        n_pad = _round_up(n_pad, tn_)
        return Plan(small_m=True, tm=m_pad, tn=tn_, tk=k_pad,
                    m_pad=m_pad, k_pad=k_pad, n_pad=n_pad, vmem_limit=vmem_limit)

    # ------------------------------ general path -----------------------------
    # Bigger tm => weight streamed fewer (M_pad/tm) times. v6e needs the most
    # arithmetic intensity vs its HBM bandwidth, so it gets the largest cap.
    tm_cap = 1024 if "v6" in kind else 512
    if tm is not None:
        tm_ = tm
    elif m_pad <= tm_cap:
        tm_ = m_pad
    else:
        tm_ = _balanced_tile(m_pad, tm_cap, unit=16)

    # Pad-to-tile instead of requiring divisibility (no tile collapse on N=11008).
    tn_ = tn if tn is not None else _balanced_tile(n_pad, 1024)
    tk_ = tk if tk is not None else _balanced_tile(k_pad, 1024)

    # Keep the working set comfortably inside the per-generation VMEM budget.
    def vmem_need(a, b, c):
        return (a * b * 4                 # f32 accumulator
                + 2 * a * c * itemsize    # x block, double buffered
                + 2 * c * b * itemsize    # w block, double buffered
                + 2 * a * b * itemsize)   # out block, double buffered
    guard = int(vmem_limit * 0.85)
    while vmem_need(tm_, tn_, tk_) > guard and tk_ > 256:
        tk_ = max(256, _round_up(tk_ // 2, 128))
    while vmem_need(tm_, tn_, tk_) > guard and tn_ > 256:
        tn_ = max(256, _round_up(tn_ // 2, 128))
    while vmem_need(tm_, tn_, tk_) > guard and tm_ > 256:
        tm_ = max(256, _round_up(tm_ // 2, 16))

    m_pad = _round_up(m_pad, tm_)
    n_pad = _round_up(n_pad, tn_)
    k_pad = _round_up(k_pad, tk_)
    return Plan(small_m=False, tm=tm_, tn=tn_, tk=tk_,
                m_pad=m_pad, k_pad=k_pad, n_pad=n_pad, vmem_limit=vmem_limit)


# -------------------------------- kernels ------------------------------------

def _matmul_kernel(x_ref, w_ref, o_ref, acc_ref):
    """General tiled matmul: accumulate over the K grid axis (last, 'arbitrary')."""
    @pl.when(pl.program_id(2) == 0)
    def _():
        acc_ref[...] = jnp.zeros_like(acc_ref)

    acc_ref[...] += jnp.dot(
        x_ref[...], w_ref[...], preferred_element_type=jnp.float32
    )

    @pl.when(pl.program_id(2) == pl.num_programs(2) - 1)
    def _():
        o_ref[...] = acc_ref[...].astype(o_ref.dtype)


def _matmul_kernel_xres(x_ref, w_ref, o_ref):
    """Small-M weight-streaming matmul: full K in one block, x resident across grid."""
    o_ref[...] = jnp.dot(
        x_ref[...], w_ref[...], preferred_element_type=jnp.float32
    ).astype(o_ref.dtype)


# ----------------------------- pallas_call wrapper ---------------------------

@functools.partial(jax.jit, static_argnames=("plan",))
def _matmul_padded(x, w, *, plan: Plan):
    """x: [m_pad, k_pad], w: [k_pad, n_pad] (already padded) -> [m_pad, n_pad]."""
    p = plan
    out_dtype = x.dtype
    itemsize = max(jnp.dtype(x.dtype).itemsize, jnp.dtype(w.dtype).itemsize)
    cost = pl.CostEstimate(
        flops=2 * p.m_pad * p.n_pad * p.k_pad,
        transcendentals=0,
        bytes_accessed=itemsize * (p.m_pad * p.k_pad + p.k_pad * p.n_pad
                                   + p.m_pad * p.n_pad),
    )

    if p.small_m:
        return pl.pallas_call(
            _matmul_kernel_xres,
            out_shape=jax.ShapeDtypeStruct((p.m_pad, p.n_pad), out_dtype),
            grid_spec=pltpu.PrefetchScalarGridSpec(
                num_scalar_prefetch=0,
                grid=(p.n_pad // p.tn,),
                in_specs=[
                    # x: constant block index -> fetched once, stays resident.
                    pl.BlockSpec((p.tm, p.tk), lambda j: (0, 0)),
                    # weight: byte-bounded tile streamed over N (double-buffered).
                    pl.BlockSpec((p.tk, p.tn), lambda j: (0, j)),
                ],
                out_specs=pl.BlockSpec((p.tm, p.tn), lambda j: (0, j)),
            ),
            compiler_params=pltpu.CompilerParams(
                dimension_semantics=("parallel",),
                vmem_limit_bytes=p.vmem_limit,
            ),
            cost_estimate=cost,
        )(x, w)

    return pl.pallas_call(
        _matmul_kernel,
        out_shape=jax.ShapeDtypeStruct((p.m_pad, p.n_pad), out_dtype),
        grid_spec=pltpu.PrefetchScalarGridSpec(
            num_scalar_prefetch=0,
            # N outermost: megacore sharding splits over N, so each TensorCore
            # streams disjoint weight tiles (no duplicated weight HBM traffic).
            grid=(p.n_pad // p.tn, p.m_pad // p.tm, p.k_pad // p.tk),
            in_specs=[
                pl.BlockSpec((p.tm, p.tk), lambda j, i, k: (i, k)),
                pl.BlockSpec((p.tk, p.tn), lambda j, i, k: (k, j)),
            ],
            out_specs=pl.BlockSpec((p.tm, p.tn), lambda j, i, k: (i, j)),
            scratch_shapes=[pltpu.VMEM((p.tm, p.tn), jnp.float32)],
        ),
        compiler_params=pltpu.CompilerParams(
            dimension_semantics=("parallel", "parallel", "arbitrary"),
            vmem_limit_bytes=p.vmem_limit,
        ),
        cost_estimate=cost,
    )(x, w)


def linear_a16_matmul(x, w, *, force_general=False, tm=None, tn=None, tk=None):
    """output = x @ w  (x: [M, K], w: [K, N]) via the tiled Pallas TPU matmul."""
    M, K = x.shape
    K2, N = w.shape
    assert K == K2, f"K mismatch: {K} vs {K2}"
    itemsize = max(jnp.dtype(x.dtype).itemsize, jnp.dtype(w.dtype).itemsize)
    plan = _make_plan(M, K, N, itemsize, force_general, tm, tn, tk)

    if (plan.m_pad, plan.k_pad) != x.shape:
        x = jnp.pad(x, ((0, plan.m_pad - M), (0, plan.k_pad - K)))
    if (plan.k_pad, plan.n_pad) != w.shape:
        w = jnp.pad(w, ((0, plan.k_pad - K), (0, plan.n_pad - N)))

    out = _matmul_padded(x, w, plan=plan)
    if (plan.m_pad, plan.n_pad) != (M, N):
        out = out[:M, :N]
    return out


# --------------------------------- module ------------------------------------

class LinearA16:
    """JAX mirror of decoupleQ LinearA16: forward is just input @ weight.

    The PyTorch module lazily processes the weight on first forward
    (`.cuda()`); here that becomes a lazy pad-to-tiles step cached per padded
    shape so the hot path never re-pads (re-copies) the full weight.
    """

    def __init__(self, in_features: int, out_features: int, bias: bool, group_size: int):
        self.k = in_features
        self.n = out_features
        self.with_bias = bias
        self.group_size = group_size  # quantization metadata; unused in forward
        # bias is allocated in the PyTorch module but never applied in forward.
        self.bias = jnp.zeros((out_features,), dtype=jnp.bfloat16)
        # Deterministic synthetic weight (real module gets it assigned externally).
        key = jax.random.PRNGKey(42)
        self.weight = (
            jax.random.normal(key, (in_features, out_features), dtype=jnp.float32) * 0.02
        ).astype(jnp.bfloat16)
        self.scale = None
        self.zp = None
        self._padded_weight_cache = {}  # (k_pad, n_pad) -> padded weight

    def _padded_weight(self, k_pad: int, n_pad: int):
        cached = self._padded_weight_cache.get((k_pad, n_pad))
        if cached is not None:
            return cached
        w = self.weight
        if (k_pad, n_pad) != w.shape:
            w = jnp.pad(w, ((0, k_pad - w.shape[0]), (0, n_pad - w.shape[1])))
        self._padded_weight_cache[(k_pad, n_pad)] = w
        return w

    def forward(self, x):
        # x: [..., K] -> [..., N]
        lead_shape = x.shape[:-1]
        x2d = x.reshape((-1, self.k))
        M = x2d.shape[0]
        itemsize = max(jnp.dtype(x2d.dtype).itemsize, jnp.dtype(self.weight.dtype).itemsize)
        plan = _make_plan(M, self.k, self.n, itemsize)
        w_pad = self._padded_weight(plan.k_pad, plan.n_pad)
        if (plan.m_pad, plan.k_pad) != x2d.shape:
            x2d = jnp.pad(x2d, ((0, plan.m_pad - M), (0, plan.k_pad - self.k)))
        out = _matmul_padded(x2d, w_pad, plan=plan)
        out = out[:M, :self.n]
        return out.reshape(lead_shape + (self.n,))


# ----------------------------------- test ------------------------------------

if __name__ == "__main__":
    # 1) Module forward (small-M / decode path).
    in_features = 256
    out_features = 256
    batch, seq = 2, 8

    mod = LinearA16(in_features, out_features, bias=False, group_size=64)

    key = jax.random.PRNGKey(0)
    x = jax.random.normal(key, (batch, seq, in_features), dtype=jnp.float32).astype(
        jnp.bfloat16
    )

    out = jax.block_until_ready(mod.forward(x))
    ref = jnp.matmul(
        x.reshape(-1, in_features).astype(jnp.float32),
        mod.weight.astype(jnp.float32),
    ).reshape(batch, seq, out_features)
    err = float(jnp.max(jnp.abs(out.astype(jnp.float32) - ref)))
    assert out.shape == (batch, seq, out_features)
    assert err < 1e-1, f"small-M path max abs err {err}"

    # 2) General path (K-grid accumulation, pad/trim, multi-step all axes) on
    #    small, deliberately awkward (non-multiple-of-128) shapes.
    k2, k3 = jax.random.split(jax.random.PRNGKey(1))
    M2, K2, N2 = 200, 300, 260
    x2 = (jax.random.normal(k2, (M2, K2), dtype=jnp.float32) * 0.1).astype(jnp.bfloat16)
    w2 = (jax.random.normal(k3, (K2, N2), dtype=jnp.float32) * 0.1).astype(jnp.bfloat16)
    out2 = jax.block_until_ready(
        linear_a16_matmul(x2, w2, force_general=True, tm=128, tn=128, tk=128)
    )
    ref2 = jnp.matmul(x2.astype(jnp.float32), w2.astype(jnp.float32))
    err2 = float(jnp.max(jnp.abs(out2.astype(jnp.float32) - ref2)))
    assert out2.shape == (M2, N2)
    assert err2 < 1e-1, f"general path max abs err {err2}"

    print("KERNEL_OK")
</pallas_src>

<mosaic_0001>
module attributes {stable_mosaic.version = 11 : i64} {
  func.func @_matmul_kernel_xres(%arg0: i32, %arg1: memref<16x256xbf16, #tpu.memory_space<vmem>>, %arg2: memref<256x128xbf16, #tpu.memory_space<vmem>>, %arg3: memref<16x128xbf16, #tpu.memory_space<vmem>>) attributes {dimension_semantics = [#tpu.dimension_semantics<parallel>], iteration_bounds = array<i64: 2>, scalar_prefetch = 0 : i64, scratch_operands = 0 : i64, tpu.core_type = #tpu.core_type<tc>, window_params = [{pipeline_mode = #tpu.pipeline_mode<synchronous>, transform_indices = @transform_0, window_bounds = array<i64: 16, 256>}, {transform_indices = @transform_1, window_bounds = array<i64: 256, 128>}, {transform_indices = @transform_2, window_bounds = array<i64: 16, 128>}]} {
    %c0 = arith.constant 0 : index
    %c0_0 = arith.constant 0 : index
    %0 = vector.load %arg1[%c0, %c0_0] : memref<16x256xbf16, #tpu.memory_space<vmem>>, vector<16x256xbf16>
    %c0_1 = arith.constant 0 : index
    %c0_2 = arith.constant 0 : index
    %1 = vector.load %arg2[%c0_1, %c0_2] : memref<256x128xbf16, #tpu.memory_space<vmem>>, vector<256x128xbf16>
    %cst = arith.constant dense<0.000000e+00> : vector<16x128xf32>
    %2 = tpu.matmul %0, %1, %cst {dimension_numbers = #tpu.dot_dimension_numbers<[1], [0], [0], [1], [0, 0, 1, 1], [], []>} : vector<16x256xbf16>, vector<256x128xbf16>, vector<16x128xf32> -> vector<16x128xf32>
    %3 = arith.truncf %2 : vector<16x128xf32> to vector<16x128xbf16>
    %c0_3 = arith.constant 0 : index
    %c0_4 = arith.constant 0 : index
    %4 = vector.load %arg3[%c0_3, %c0_4] : memref<16x128xbf16, #tpu.memory_space<vmem>>, vector<16x128xbf16>
    tpu.vector_store %arg3[%c0_3, %c0_4], %3 {strides = array<i32>} : memref<16x128xbf16, #tpu.memory_space<vmem>>, vector<16x128xbf16>,
    return
  }
  func.func @transform_0(%arg0: i32) -> (i32, i32) {
    %c0_i32 = arith.constant 0 : i32
    %c0_i32_0 = arith.constant 0 : i32
    %c0_i32_1 = arith.constant 0 : i32
    return %c0_i32, %c0_i32_0 : i32, i32
  }
  func.func @transform_1(%arg0: i32) -> (i32, i32) {
    %c0_i32 = arith.constant 0 : i32
    %c0_i32_0 = arith.constant 0 : i32
    return %c0_i32, %arg0 : i32, i32
  }
  func.func @transform_2(%arg0: i32) -> (i32, i32) {
    %c0_i32 = arith.constant 0 : i32
    %c0_i32_0 = arith.constant 0 : i32
    return %c0_i32, %arg0 : i32, i32
  }
}

</mosaic_0001>

<llo_original>
// kernel: _matmul_padded.1
$region0: #{_matmul_padded.1}
  #allocation0 [shape = 'u32[]', space=smem, size = 0x4, offset = 0x4, fixed_abs, tag = 'smem constant byte address 0x4 - core index']
  #allocation1 [shape = 'u32[144,128]{1,0:T(1,128)}', space=vmem, size = 0x12000, scoped, tag = 'internal scratch']
  %s0 = inlined_call_operand.hbm [shape: bf16[16,256], index: 0, kind: input, shape index: {}]
  %s1 = inlined_call_operand.hbm [shape: bf16[256,256], index: 1, kind: input, shape index: {}]
  %s2 = inlined_call_operand.hbm [shape: bf16[16,256], index: 2, kind: output, shape index: {}]
  %s3 = sld [smem:[#allocation0]]
  $region49: #{_matmul_padded.1} parent=0
    _
  %s5 = ssub.s32 1, %s3
  %s6 = scalar_select 0, %s5, %s3
  $region1: #{_matmul_padded.1} parent=0
    #allocation2 [shape = 'u8[8192]{0}', space=vmem, size = 0x2000, scoped, tag = 'input window, operand 0, single buffered']
    #allocation3 [shape = 's32[2]{0}', space=sflag, size = 0x8, scoped, tag = 'scoped memory for _matmul_padded.1']
    #allocation4 [shape = 's32[2]{0}', space=sflag, size = 0x8, scoped, tag = 'scoped memory for _matmul_padded.1']
    #allocation5 [shape = 'u8[131072]{0}', space=vmem, size = 0x20000, scoped, tag = 'input window, operand 1']
    #allocation6 [shape = 's32[2]{0}', space=sflag, size = 0x8, scoped, tag = 'scoped memory for _matmul_padded.1']
    #allocation7 [shape = 'u8[8192]{0}', space=vmem, size = 0x2000, scoped, tag = 'output window, operand 0']
    %7 = vsyncpa [#allocation3], 0
    %8 = vsyncpa [#allocation6], 0
    %s9 = scalar_lea.sflag [#allocation6], 1
    %10 = vsyncpa %s9, 0
    %11 = vsyncpa [#allocation4], 0
    %s12 = scalar_lea.sflag [#allocation4], 1
    %13 = vsyncpa %s12, 0
    loop: start=0, step=1, limit=4
    $region2: #{_matmul_padded.1} parent=1 // loop_pre_header
      _
    $region3: #{_matmul_padded.1} parent=1 // loop_header
      %s15 = sphi 0, %s19
      %p16 = scmp.ge.s32.totalorder %s15, 4
      %s23 = sphi 0, %s23
      %s25 = sphi 0, %s23
      %s26 = sphi 0, %s25
      %s40 = sphi 0, %s26
      %s46 = sphi 0, %s48
      %s49 = sphi 0, %s46
      %s50 = sphi 0, %s49
      %s66 = sphi 0, %s50
      %s72 = sphi 0, %s74
      %s75 = sphi 0, %s72
      %s76 = sphi 0, %s75
      %s92 = sphi 0, %s76
    $region4: #{_matmul_padded.1} parent=1 // loop_header_branch
      %18 = sbr.rel (%p16) target = $region8
    $region5: #{_matmul_padded.1} parent=1 // loop_body
      %s20 = ssub.s32 %s15, 1
      %s21 = ssub.s32 %s15, 2
      %s22 = sadd.s32 %s15, 1
      %s24 = sadd.s32 %s23, 1
      %p27 = scmp.eq.s32.totalorder %s15, 1
      %p28 = scmp.ne.s32.totalorder %s23, %s25
      %p29 = scmp.eq.s32.totalorder %s15, 0
      %p30 = por %p28, %p29
      %p31 = scmp.ne.s32.totalorder %s23, %s25
      %p32 = scmp.eq.s32.totalorder %s20, 1
      %p33 = por %p31, %p32
      %p34 = scmp.ne.s32.totalorder %s25, %s26
      %p35 = scmp.eq.s32.totalorder %s20, 0
      %p36 = por %p34, %p35
      %p37 = scmp.ne.s32.totalorder %s25, %s26
      %p38 = scmp.eq.s32.totalorder %s21, 1
      %p39 = por %p37, %p38
      %p41 = scmp.ne.s32.totalorder %s26, %s40
      %p42 = scmp.eq.s32.totalorder %s21, 0
      %p43 = por %p41, %p42
      %s44 = ssub.s32 %s15, %s22
      %p45 = scmp.eq.s32.totalorder %s44, 0
      %s47 = sadd.s32 %s46, 1
      %s48 = scalar_select %p45, %s46, %s47
      %p51 = pneg %p45
      %p52 = scmp.eq.s32.totalorder %s15, 1
      %p53 = por %p51, %p52
      %p54 = scmp.ne.s32.totalorder %s46, %s49
      %p55 = scmp.eq.s32.totalorder %s15, 0
      %p56 = por %p54, %p55
      %p57 = scmp.ne.s32.totalorder %s46, %s49
      %p58 = scmp.eq.s32.totalorder %s20, 1
      %p59 = por %p57, %p58
      %p60 = scmp.ne.s32.totalorder %s49, %s50
      %p61 = scmp.eq.s32.totalorder %s20, 0
      %p62 = por %p60, %p61
      %p63 = scmp.ne.s32.totalorder %s49, %s50
      %p64 = scmp.eq.s32.totalorder %s21, 1
      %p65 = por %p63, %p64
      %p67 = scmp.ne.s32.totalorder %s50, %s66
      %p68 = scmp.eq.s32.totalorder %s21, 0
      %p69 = por %p67, %p68
      %s70 = ssub.s32 %s15, %s22
      %p71 = scmp.eq.s32.totalorder %s70, 0
      %s73 = sadd.s32 %s72, 1
      %s74 = scalar_select %p71, %s72, %s73
      %p77 = pneg %p71
      %p78 = scmp.eq.s32.totalorder %s15, 1
      %p79 = por %p77, %p78
      %p80 = scmp.ne.s32.totalorder %s72, %s75
      %p81 = scmp.eq.s32.totalorder %s15, 0
      %p82 = por %p80, %p81
      %p83 = scmp.ne.s32.totalorder %s72, %s75
      %p84 = scmp.eq.s32.totalorder %s20, 1
      %p85 = por %p83, %p84
      %p86 = scmp.ne.s32.totalorder %s75, %s76
      %p87 = scmp.eq.s32.totalorder %s20, 0
      %p88 = por %p86, %p87
      %p89 = scmp.ne.s32.totalorder %s75, %s76
      %p90 = scmp.eq.s32.totalorder %s21, 1
      %p91 = por %p89, %p90
      %p93 = scmp.ne.s32.totalorder %s76, %s92
      %p94 = scmp.eq.s32.totalorder %s21, 0
      %p95 = por %p93, %p94
      %p96 = scmp.le.s32.totalorder 1, %s15
      %p97 = scmp.lt.s32.totalorder %s15, 3
      %p98 = pnand %p96, %p97
      %p99 = pneg %p98
      // Predicated region
      $region9: #{_matmul_padded.1} parent=5 // pred_check
        _
      $region10: #{_matmul_padded.1} parent=5 // pred_check_branch
        %101 = sbr.rel (%p98) target = $region12
      $region11: #{_matmul_padded.1} parent=5 // pred_region
        %s102 = ssub.s32 %s15, 1
        // Predicated region
        $region13: #{_matmul_padded.1} parent=11 // pred_check
          %p103 = pneg %p36
        $region14: #{_matmul_padded.1} parent=11 // pred_check_branch
          %105 = sbr.rel (%p103) target = $region16
        $region15: #{_matmul_padded.1} parent=11 // pred_region
          %s107 = ssub.s32 256, 256
          %108 = vsyncadd [#allocation3], %s107
          %s109 = sshll.u32 [#allocation2], 4
          %s110 = int_to_ptr.vmem [resolvable:$true] %s109
          %115 = dma.hbm_to_vmem [thread:$0]  %s0, 256, %s110, [#allocation3], 128, 128, 8
        $region16: #{_matmul_padded.1} parent=11 // pred_fallthru
          _
      $region12: #{_matmul_padded.1} parent=5 // pred_fallthru
        _
      %p116 = scmp.lt.s32.totalorder %s15, 2
      // Predicated region
      $region17: #{_matmul_padded.1} parent=5 // pred_check
        %p117 = pneg %p116
      $region18: #{_matmul_padded.1} parent=5 // pred_check_branch
        %119 = sbr.rel (%p117) target = $region20
      $region19: #{_matmul_padded.1} parent=5 // pred_region
        // Predicated region
        $region21: #{_matmul_padded.1} parent=19 // pred_check
          %p120 = pneg %p56
        $region22: #{_matmul_padded.1} parent=19 // pred_check_branch
          %122 = sbr.rel (%p120) target = $region24
        $region23: #{_matmul_padded.1} parent=19 // pred_region
          %s123 = sand.u32 %s46, 1
          %s124 = scalar_lea.sflag [#allocation6], %s123
          %s125 = sand.u32 %s46, 1
          %s126 = smul.addr %s125, 128
          %s127 = scalar_lea.vmem [#allocation5], %s126
          %s129 = ssub.s32 2048, 2048
          %130 = vsyncadd %s124, %s129
          %s131 = smul.addr %s15, 64
          %s132 = scalar_lea.hbm %s1, %s131
          %s133 = sshll.u32 %s127, 4
          %s134 = int_to_ptr.vmem [resolvable:$true] %s133
          %139 = dma.hbm_to_vmem [thread:$0]  %s132, 2048, %s134, %s124, 128, 64, 4
        $region24: #{_matmul_padded.1} parent=19 // pred_fallthru
          _
      $region20: #{_matmul_padded.1} parent=5 // pred_fallthru
        _
      %p140 = scmp.le.s32.totalorder 1, %s15
      %p141 = scmp.lt.s32.totalorder %s15, 3
      %p142 = pnand %p140, %p141
      %p143 = pneg %p142
      // Predicated region
      $region25: #{_matmul_padded.1} parent=5 // pred_check
        _
      $region26: #{_matmul_padded.1} parent=5 // pred_check_branch
        %145 = sbr.rel (%p142) target = $region28
      $region27: #{_matmul_padded.1} parent=5 // pred_region
        %s146 = ssub.s32 %s15, 1
        // Predicated region
        $region29: #{_matmul_padded.1} parent=27 // pred_check
          %p147 = pneg %p36
        $region30: #{_matmul_padded.1} parent=27 // pred_check_branch
          %149 = sbr.rel (%p147) target = $region32
        $region31: #{_matmul_padded.1} parent=27 // pred_region
          %150 = dma.done [#allocation3], 256
        $region32: #{_matmul_padded.1} parent=27 // pred_fallthru
          _
        %s151 = sand.u32 %s49, 1
        %s152 = scalar_lea.sflag [#allocation6], %s151
        %s153 = sand.u32 %s49, 1
        %s154 = smul.addr %s153, 128
        %s155 = scalar_lea.vmem [#allocation5], %s154
        // Predicated region
        $region33: #{_matmul_padded.1} parent=27 // pred_check
          %p156 = pneg %p62
        $region34: #{_matmul_padded.1} parent=27 // pred_check_branch
          %158 = sbr.rel (%p156) target = $region36
        $region35: #{_matmul_padded.1} parent=27 // pred_region
          %159 = dma.done %s152, 2048
        $region36: #{_matmul_padded.1} parent=27 // pred_fallthru
          _
        %p160 = pneg %p36
        %p161 = pneg %p33
        %s162 = sand.u32 %s49, 1
        %s163 = scalar_lea.sflag [#allocation6], %s162
        %s164 = sand.u32 %s49, 1
        %s165 = smul.addr %s164, 128
        %s166 = scalar_lea.vmem [#allocation5], %s165
        %p167 = pneg %p62
        %p168 = pneg %p59
        %p169 = pneg %p88
        %p170 = pneg %p85
        %s171 = sand.u32 %s75, 1
        %s172 = scalar_lea.sflag [#allocation4], %s171
        %s173 = sand.u32 %s75, 1
        %s174 = smul.addr %s173, 8
        %s175 = scalar_lea.vmem [#allocation7], %s174
        %v177 = vld [vmem:[#allocation2] sm:$0xff]
        %v178 = vld [vmem:[#allocation2 + $0x8] sm:$0xff]
        %v179 = vld [vmem:[%s155] sm:$0xf]
        %v180 = vld [vmem:[%s155 + $0x4] sm:$0xf]
        %v181 = vld [vmem:[%s155 + $0x8] sm:$0xf]
        %v182 = vld [vmem:[%s155 + $0xc] sm:$0xf]
        %v183 = vld [vmem:[%s155 + $0x10] sm:$0xf]
        %v184 = vld [vmem:[%s155 + $0x14] sm:$0xf]
        %v185 = vld [vmem:[%s155 + $0x18] sm:$0xf]
        %v186 = vld [vmem:[%s155 + $0x1c] sm:$0xf]
        %v187 = vld [vmem:[%s155 + $0x20] sm:$0xf]
        %v188 = vld [vmem:[%s155 + $0x24] sm:$0xf]
        %v189 = vld [vmem:[%s155 + $0x28] sm:$0xf]
        %v190 = vld [vmem:[%s155 + $0x2c] sm:$0xf]
        %v191 = vld [vmem:[%s155 + $0x30] sm:$0xf]
        %v192 = vld [vmem:[%s155 + $0x34] sm:$0xf]
        %v193 = vld [vmem:[%s155 + $0x38] sm:$0xf]
        %v194 = vld [vmem:[%s155 + $0x3c] sm:$0xf]
        %v195 = vld [vmem:[%s155 + $0x40] sm:$0xf]
        %v196 = vld [vmem:[%s155 + $0x44] sm:$0xf]
        %v197 = vld [vmem:[%s155 + $0x48] sm:$0xf]
        %v198 = vld [vmem:[%s155 + $0x4c] sm:$0xf]
        %v199 = vld [vmem:[%s155 + $0x50] sm:$0xf]
        %v200 = vld [vmem:[%s155 + $0x54] sm:$0xf]
        %v201 = vld [vmem:[%s155 + $0x58] sm:$0xf]
        %v202 = vld [vmem:[%s155 + $0x5c] sm:$0xf]
        %v203 = vld [vmem:[%s155 + $0x60] sm:$0xf]
        %v204 = vld [vmem:[%s155 + $0x64] sm:$0xf]
        %v205 = vld [vmem:[%s155 + $0x68] sm:$0xf]
        %v206 = vld [vmem:[%s155 + $0x6c] sm:$0xf]
        %v207 = vld [vmem:[%s155 + $0x70] sm:$0xf]
        %v208 = vld [vmem:[%s155 + $0x74] sm:$0xf]
        %v209 = vld [vmem:[%s155 + $0x78] sm:$0xf]
        %v210 = vld [vmem:[%s155 + $0x7c] sm:$0xf]
        %v213 = vunpack.c.l.b16 %v177
        %v214 = vunpack.c.h.b16 %v177
        %v215 = vunpack.c.l.b16 %v178
        %v216 = vunpack.c.h.b16 %v178
        %v217 = vpack.c.b16 %v215, %v213
        %v218 = vpack.c.b16 %v216, %v214
        %v253 = vunpack.c.l.b16 %v179
        %v254 = vunpack.c.l.b16 %v180
        %v255 = vunpack.c.l.b16 %v181
        %v256 = vunpack.c.l.b16 %v182
        %v257 = vunpack.c.l.b16 %v183
        %v258 = vunpack.c.l.b16 %v184
        %v259 = vunpack.c.l.b16 %v185
        %v260 = vunpack.c.l.b16 %v186
        %v261 = vunpack.c.l.b16 %v187
        %v262 = vunpack.c.l.b16 %v188
        %v263 = vunpack.c.l.b16 %v189
        %v264 = vunpack.c.l.b16 %v190
        %v265 = vunpack.c.l.b16 %v191
        %v266 = vunpack.c.l.b16 %v192
        %v267 = vunpack.c.l.b16 %v193
        %v268 = vunpack.c.l.b16 %v194
        %v269 = vunpack.c.l.b16 %v195
        %v270 = vunpack.c.l.b16 %v196
        %v271 = vunpack.c.l.b16 %v197
        %v272 = vunpack.c.l.b16 %v198
        %v273 = vunpack.c.l.b16 %v199
        %v274 = vunpack.c.l.b16 %v200
        %v275 = vunpack.c.l.b16 %v201
        %v276 = vunpack.c.l.b16 %v202
        %v277 = vunpack.c.l.b16 %v203
        %v278 = vunpack.c.l.b16 %v204
        %v279 = vunpack.c.l.b16 %v205
        %v280 = vunpack.c.l.b16 %v206
        %v281 = vunpack.c.l.b16 %v207
        %v282 = vunpack.c.l.b16 %v208
        %v283 = vunpack.c.l.b16 %v209
        %v284 = vunpack.c.l.b16 %v210
        %v285 = vpack.c.b16 %v254, %v253
        %v286 = vpack.c.b16 %v256, %v255
        %v287 = vpack.c.b16 %v258, %v257
        %v288 = vpack.c.b16 %v260, %v259
        %v289 = vpack.c.b16 %v262, %v261
        %v290 = vpack.c.b16 %v264, %v263
        %v291 = vpack.c.b16 %v266, %v265
        %v292 = vpack.c.b16 %v268, %v267
        %v293 = vpack.c.b16 %v270, %v269
        %v294 = vpack.c.b16 %v272, %v271
        %v295 = vpack.c.b16 %v274, %v273
        %v296 = vpack.c.b16 %v276, %v275
        %v297 = vpack.c.b16 %v278, %v277
        %v298 = vpack.c.b16 %v280, %v279
        %v299 = vpack.c.b16 %v282, %v281
        %v300 = vpack.c.b16 %v284, %v283
        %317 = vmatprep.subr.bf16.mxu0 0
        %318 = vmatpush1.bf16.msra.mxu0 %v285
        %319 = vmatprep.subr.bf16.mxu0 0
        %320 = vmatpush1.bf16.msra.mxu0 %v286
        %321 = vmatprep.subr.bf16.mxu0 0
        %322 = vmatpush1.bf16.msra.mxu0 %v287
        %323 = vmatprep.subr.bf16.mxu0 0
        %324 = vmatpush1.bf16.msra.mxu0 %v288
        %325 = vmatprep.subr.bf16.mxu0 0
        %326 = vmatpush1.bf16.msra.mxu0 %v289
        %327 = vmatprep.subr.bf16.mxu0 0
        %328 = vmatpush1.bf16.msra.mxu0 %v290
        %329 = vmatprep.subr.bf16.mxu0 0
        %330 = vmatpush1.bf16.msra.mxu0 %v291
        %331 = vmatprep.subr.bf16.mxu0 0
        %332 = vmatpush1.bf16.msra.mxu0 %v292
        %333 = vmatprep.subr.bf16.mxu0 0
        %334 = vmatpush1.bf16.msra.mxu0 %v293
        %335 = vmatprep.subr.bf16.mxu0 0
        %336 = vmatpush1.bf16.msra.mxu0 %v294
        %337 = vmatprep.subr.bf16.mxu0 0
        %338 = vmatpush1.bf16.msra.mxu0 %v295
        %339 = vmatprep.subr.bf16.mxu0 0
        %340 = vmatpush1.bf16.msra.mxu0 %v296
        %341 = vmatprep.subr.bf16.mxu0 0
        %342 = vmatpush1.bf16.msra.mxu0 %v297
        %343 = vmatprep.subr.bf16.mxu0 0
        %344 = vmatpush1.bf16.msra.mxu0 %v298
        %345 = vmatprep.subr.bf16.mxu0 0
        %346 = vmatpush1.bf16.msra.mxu0 %v299
        %347 = vmatprep.subr.bf16.mxu0 0
        %348 = vmatpush1.bf16.msra.mxu0 %v300
        %349 = vmatprep.mubr.bf16.mxu0 %v218
        %350 = vmatmul.mubr.bf16.gmra.mrb[0].mxu0 %v217
        %v351 = vpop.f32.mrb[0].mxu0
        %v352 = vadd.f32 0.0, %v351
        %v353 = vpop.f32.mrb[0].mxu0
        %v354 = vpop.f32.mrb[0].mxu0
        %v355 = vadd.f32 0.0, %v354
        %v356 = vpop.f32.mrb[0].mxu0
        %357 = vdwg.mxu0
        %v358 = vpack.c.bf16 %v355, %v352
        %v360 = vunpack.c.l.b16 %v358
        %v361 = vunpack.c.h.b16 %v358
        %v362 = vpack.c.b16 %v360, %v360
        %v363 = vpack.c.b16 %v361, %v361
        %366 = vst [vmem:[%s175] sm:$0xf] %v362
        %367 = vst [vmem:[%s175 + $0x4] sm:$0xf] %v363
        %s368 = sand.u32 %s75, 1
        %s369 = scalar_lea.sflag [#allocation4], %s368
        %s370 = sand.u32 %s75, 1
        %s371 = smul.addr %s370, 8
        %s372 = scalar_lea.vmem [#allocation7], %s371
        // Predicated region
        $region37: #{_matmul_padded.1} parent=27 // pred_check
          %p373 = pneg %p85
        $region38: #{_matmul_padded.1} parent=27 // pred_check_branch
          %375 = sbr.rel (%p373) target = $region40
        $region39: #{_matmul_padded.1} parent=27 // pred_region
          %s377 = ssub.s32 128, 128
          %378 = vsyncadd %s369, %s377
          %s379 = smul.addr %s20, 64
          %s380 = scalar_lea.hbm %s2, %s379
          %s381 = sshll.u32 %s372, 4
          %s382 = int_to_ptr.vmem [resolvable:$true] %s381
          %387 = dma.vmem_to_hbm [thread:$0]  %s382, 128, %s380, %s369, 64, 128, 4
        $region40: #{_matmul_padded.1} parent=27 // pred_fallthru
          _
      $region28: #{_matmul_padded.1} parent=5 // pred_fallthru
        _
      %p388 = scmp.le.s32.totalorder 2, %s15
      // Predicated region
      $region41: #{_matmul_padded.1} parent=5 // pred_check
        %p389 = pneg %p388
      $region42: #{_matmul_padded.1} parent=5 // pred_check_branch
        %391 = sbr.rel (%p389) target = $region44
      $region43: #{_matmul_padded.1} parent=5 // pred_region
        %s392 = ssub.s32 %s15, 2
        // Predicated region
        $region45: #{_matmul_padded.1} parent=43 // pred_check
          %p393 = pneg %p91
        $region46: #{_matmul_padded.1} parent=43 // pred_check_branch
          %395 = sbr.rel (%p393) target = $region48
        $region47: #{_matmul_padded.1} parent=43 // pred_region
          %s396 = sand.u32 %s76, 1
          %s397 = scalar_lea.sflag [#allocation4], %s396
          %s398 = sand.u32 %s76, 1
          %s399 = smul.addr %s398, 8
          %s400 = scalar_lea.vmem [#allocation7], %s399
          %401 = dma.done %s397, 128
        $region48: #{_matmul_padded.1} parent=43 // pred_fallthru
          _
      $region44: #{_matmul_padded.1} parent=5 // pred_fallthru
        _
    $region6: #{_matmul_padded.1} parent=1 // loop_footer
      %s19 = sadd.s32 1, %s15
    $region7: #{_matmul_padded.1} parent=1 // loop_footer_branch
      %14 = sbr.rel target = $region3
    $region8: #{_matmul_padded.1} parent=1 // loop_exit
      _
    %402 = vsyncpa [#allocation3], 1
    %s403 = scalar_lea.sflag [#allocation3], 1
    %404 = vsyncpa %s403, 1
    %405 = vsyncpa [#allocation6], 1
    %s406 = scalar_lea.sflag [#allocation6], 1
    %407 = vsyncpa %s406, 1
    %408 = vsyncpa [#allocation4], 1
    %s409 = scalar_lea.sflag [#allocation4], 1
    %410 = vsyncpa %s409, 1

</llo_original>
